<compile_context>
chip_gen: v7x
topology: tpu7x:2x2x1
jax: 0.10.0
libtpu: 0.0.40
codegen_flags: <defaults>
</compile_context>

<pallas_src>
import functools
import math

import jax
import jax.numpy as jnp
from jax import lax
from jax.experimental import pallas as pl
from jax.experimental.pallas import tpu as pltpu


_VMEM_LIMIT = 32 * 1024 * 1024   # explicit scoped-VMEM budget (safe on v5e/v6e/v7x)


# ----------------------------- helpers --------------------------------------

def _round_up(x, m):
    return (x + m - 1) // m * m


def _pick_tile(n, cands, default):
    """Largest candidate tile that divides n (no padding); else pad to `default`."""
    for c in cands:
        if n % c == 0:
            return c, n
    return default, _round_up(n, default)


def _gelu(x):
    # TODO(synk): torch nn.GELU is exact erf-GELU; tanh approximation used here
    #             (guaranteed Mosaic lowering), max abs deviation ~1e-3.
    return jax.nn.gelu(x, approximate=True)


# ----------------------------- tiled matmul kernel ---------------------------

def _matmul_kernel(*refs, activation, fuse_residual, has_ln, ln_eps):
    x_ref, w_ref, b_ref = refs[0], refs[1], refs[2]
    idx = 3
    if has_ln:
        lng_ref, lnb_ref = refs[idx], refs[idx + 1]
        idx += 2
    if fuse_residual:
        res_ref, g_ref = refs[idx], refs[idx + 1]
        idx += 2
    o_ref, acc_ref = refs[idx], refs[idx + 1]

    @pl.when(pl.program_id(2) == 0)
    def _():
        acc_ref[...] = jnp.zeros_like(acc_ref)

    x = x_ref[...]
    if has_ln:
        # LayerNorm prologue (requires tk == K so the full row is resident).
        xf = x.astype(jnp.float32)
        mu = jnp.mean(xf, axis=-1, keepdims=True)
        xc = xf - mu
        var = jnp.mean(xc * xc, axis=-1, keepdims=True)
        x = (xc * lax.rsqrt(var + ln_eps) * lng_ref[...]
             + lnb_ref[...]).astype(jnp.bfloat16)
    acc_ref[...] += jnp.dot(x, w_ref[...], preferred_element_type=jnp.float32)

    @pl.when(pl.program_id(2) == pl.num_programs(2) - 1)
    def _():
        y = acc_ref[...] + b_ref[...]
        if activation == "gelu":
            y = _gelu(y)
        if fuse_residual:
            y = res_ref[...].astype(jnp.float32) + g_ref[...] * y
        o_ref[...] = y.astype(o_ref.dtype)


def pallas_linear(x, w, b, *, activation=None, residual=None, gamma=None,
                  ln=None, out_dtype=jnp.bfloat16):
    """y = act(LN?(x) @ w + b), optionally y = residual + gamma * act(...).

    bf16 MXU operands, f32 VMEM accumulator, bf16 (default) output.
    weights stored (in, out). ln = (gamma, beta, eps) fuses a LayerNorm prologue.
    """
    *lead, K = x.shape
    M = math.prod(lead)
    N = w.shape[1]
    fuse_residual = residual is not None
    has_ln = ln is not None

    # tile selection: avoid pads when tiles divide evenly; 512-class tiles.
    if M <= 512:
        tm = _round_up(M, 8)
        Mp = tm
    else:
        tm, Mp = _pick_tile(M, (512, 256, 128), 256)
    if N <= 512:
        tn, Np = N, N
    else:
        tn, Np = _pick_tile(N, (512, 256, 128), 256)
    if has_ln:
        assert K <= 2048, "LN fusion requires full K rows in one tile"
        tk, Kp = K, K
    elif K <= 1024:
        tk, Kp = K, K
    else:
        tk, Kp = _pick_tile(K, (1024, 512, 256, 128), 512)

    x2 = x.reshape(M, K).astype(jnp.bfloat16)
    if (Mp, Kp) != (M, K):
        x2 = jnp.pad(x2, ((0, Mp - M), (0, Kp - K)))
    wb = w.astype(jnp.bfloat16)
    if (Kp, Np) != (K, N):
        wb = jnp.pad(wb, ((0, Kp - K), (0, Np - N)))
    b2 = b.reshape(1, N).astype(jnp.float32)
    if Np != N:
        b2 = jnp.pad(b2, ((0, 0), (0, Np - N)))

    inputs = [x2, wb, b2]
    in_specs = [pl.BlockSpec((tm, tk), lambda i, j, k: (i, k)),
                pl.BlockSpec((tk, tn), lambda i, j, k: (k, j)),
                pl.BlockSpec((1, tn), lambda i, j, k: (0, j))]
    ln_eps = 0.0
    if has_ln:
        lng, lnb, ln_eps = ln
        inputs += [lng.reshape(1, K).astype(jnp.float32),
                   lnb.reshape(1, K).astype(jnp.float32)]
        in_specs += [pl.BlockSpec((1, K), lambda i, j, k: (0, 0)),
                     pl.BlockSpec((1, K), lambda i, j, k: (0, 0))]
    if fuse_residual:
        r2 = residual.reshape(M, N).astype(jnp.bfloat16)
        g2 = gamma.reshape(1, N).astype(jnp.float32)
        if (Mp, Np) != (M, N):
            r2 = jnp.pad(r2, ((0, Mp - M), (0, Np - N)))
        if Np != N:
            g2 = jnp.pad(g2, ((0, 0), (0, Np - N)))
        inputs += [r2, g2]
        in_specs += [pl.BlockSpec((tm, tn), lambda i, j, k: (i, j)),
                     pl.BlockSpec((1, tn), lambda i, j, k: (0, j))]

    out = pl.pallas_call(
        functools.partial(_matmul_kernel, activation=activation,
                          fuse_residual=fuse_residual, has_ln=has_ln,
                          ln_eps=ln_eps),
        out_shape=jax.ShapeDtypeStruct((Mp, Np), out_dtype),
        grid=(Mp // tm, Np // tn, Kp // tk),
        in_specs=in_specs,
        out_specs=pl.BlockSpec((tm, tn), lambda i, j, k: (i, j)),
        scratch_shapes=[pltpu.VMEM((tm, tn), jnp.float32)],
        compiler_params=pltpu.CompilerParams(
            dimension_semantics=("parallel", "parallel", "arbitrary"),
            vmem_limit_bytes=_VMEM_LIMIT),
    )(*inputs)
    if (Mp, Np) != (M, N):
        out = out[:M, :N]
    return out.reshape(*lead, N)


# ----------------------------- standalone layernorm --------------------------

def _layernorm_kernel(x_ref, g_ref, b_ref, o_ref, *, eps):
    x = x_ref[...].astype(jnp.float32)
    mu = jnp.mean(x, axis=-1, keepdims=True)
    xc = x - mu
    var = jnp.mean(xc * xc, axis=-1, keepdims=True)
    o_ref[...] = (xc * lax.rsqrt(var + eps) * g_ref[...]
                  + b_ref[...]).astype(o_ref.dtype)


def pallas_layernorm(x, g, b, eps):
    *lead, C = x.shape
    M = math.prod(lead)
    if M <= 1024:
        tm = _round_up(M, 8)
        Mp = tm
    else:
        tm, Mp = _pick_tile(M, (512, 256, 128), 256)
    x2 = x.reshape(M, C)
    if Mp != M:
        x2 = jnp.pad(x2, ((0, Mp - M), (0, 0)))
    out = pl.pallas_call(
        functools.partial(_layernorm_kernel, eps=eps),
        out_shape=jax.ShapeDtypeStruct((Mp, C), jnp.bfloat16),
        grid=(Mp // tm,),
        in_specs=[pl.BlockSpec((tm, C), lambda i: (i, 0)),
                  pl.BlockSpec((1, C), lambda i: (0, 0)),
                  pl.BlockSpec((1, C), lambda i: (0, 0))],
        out_specs=pl.BlockSpec((tm, C), lambda i: (i, 0)),
        compiler_params=pltpu.CompilerParams(
            dimension_semantics=("parallel",),
            vmem_limit_bytes=_VMEM_LIMIT),
    )(x2, g.reshape(1, C).astype(jnp.float32), b.reshape(1, C).astype(jnp.float32))
    if Mp != M:
        out = out[:M]
    return out.reshape(*lead, C)


# ----------------------------- flash SDPA (fused heads / fused kv) -----------

def _flash_sdpa_kernel(q_ref, kv_ref, o_ref, qs_ref, m_ref, l_ref, acc_ref, *,
                       scale, num_heads, nk_true, needs_mask):
    ki = pl.program_id(2)
    tq, D = q_ref.shape[1], q_ref.shape[2]
    tkn = kv_ref.shape[1]
    d = D // num_heads

    @pl.when(ki == 0)
    def _():
        m_ref[...] = jnp.full(m_ref.shape, -1e30, jnp.float32)
        l_ref[...] = jnp.zeros(l_ref.shape, jnp.float32)
        acc_ref[...] = jnp.zeros(acc_ref.shape, jnp.float32)
        # hoist q relayout + scale out of the KV loop (constant along ki)
        q = q_ref[0].astype(jnp.float32) * scale
        qs_ref[...] = q.reshape(tq, num_heads, d).transpose(1, 0, 2).astype(
            jnp.bfloat16)

    kv = kv_ref[0]
    k = kv[:, :D].reshape(tkn, num_heads, d).transpose(1, 0, 2)   # (H, tk, d)
    v = kv[:, D:].reshape(tkn, num_heads, d).transpose(1, 0, 2)

    s = jnp.einsum('hqd,hkd->hqk', qs_ref[...], k,
                   preferred_element_type=jnp.float32)            # (H, tq, tk)
    if needs_mask:
        kpos = ki * tkn + lax.broadcasted_iota(jnp.int32, (1, 1, tkn), 2)
        s = jnp.where(kpos < nk_true, s, -1e30)

    m_prev = m_ref[...]
    m_new = jnp.maximum(m_prev, jnp.max(s, axis=-1, keepdims=True))
    alpha = jnp.exp(m_prev - m_new)
    p = jnp.exp(s - m_new)
    l_ref[...] = alpha * l_ref[...] + jnp.sum(p, axis=-1, keepdims=True)
    acc_ref[...] = alpha * acc_ref[...] + jnp.einsum(
        'hqk,hkd->hqd', p.astype(jnp.bfloat16), v,
        preferred_element_type=jnp.float32)
    m_ref[...] = m_new

    @pl.when(ki == pl.num_programs(2) - 1)
    def _():
        o = acc_ref[...] * pl.reciprocal(l_ref[...], approx=True)
        o_ref[0] = o.transpose(1, 0, 2).reshape(tq, D).astype(o_ref.dtype)


def pallas_flash_sdpa(q, kv, *, num_heads, scale):
    """softmax(scale*q @ k^T) @ v; q:(B,Nq,D), kv:(B,Nk,2D) fused, bf16 I/O."""
    B, Nq, D = q.shape
    Nk = kv.shape[1]
    d = D // num_heads

    if Nq <= 128:
        tq, Nqp = Nq, Nq
    else:
        tq, Nqp = _pick_tile(Nq, (128, 256), 128)
    if Nk <= 512:
        tkn, Nkp = Nk, Nk
    else:
        tkn, Nkp = _pick_tile(Nk, (512, 256, 128), 512)
    needs_mask = (Nkp != Nk)

    qb = q.astype(jnp.bfloat16)
    kvb = kv.astype(jnp.bfloat16)
    if Nqp != Nq:
        qb = jnp.pad(qb, ((0, 0), (0, Nqp - Nq), (0, 0)))
    if Nkp != Nk:
        kvb = jnp.pad(kvb, ((0, 0), (0, Nkp - Nk), (0, 0)))

    out = pl.pallas_call(
        functools.partial(_flash_sdpa_kernel, scale=scale, num_heads=num_heads,
                          nk_true=Nk, needs_mask=needs_mask),
        out_shape=jax.ShapeDtypeStruct((B, Nqp, D), jnp.bfloat16),
        grid=(B, Nqp // tq, Nkp // tkn),
        in_specs=[pl.BlockSpec((1, tq, D), lambda b, qi, ki: (b, qi, 0)),
                  pl.BlockSpec((1, tkn, 2 * D), lambda b, qi, ki: (b, ki, 0))],
        out_specs=pl.BlockSpec((1, tq, D), lambda b, qi, ki: (b, qi, 0)),
        scratch_shapes=[pltpu.VMEM((num_heads, tq, d), jnp.bfloat16),
                        pltpu.VMEM((num_heads, tq, 1), jnp.float32),
                        pltpu.VMEM((num_heads, tq, 1), jnp.float32),
                        pltpu.VMEM((num_heads, tq, d), jnp.float32)],
        compiler_params=pltpu.CompilerParams(
            dimension_semantics=("parallel", "parallel", "arbitrary"),
            vmem_limit_bytes=_VMEM_LIMIT),
    )(qb, kvb)
    if Nqp != Nq:
        out = out[:, :Nq]
    return out


# ----------------------------- channel-processing attention ------------------
# gate[h,c] = sigmoid( softmax_N(q)^T @ mean_c'(softmax_N(k)) ) * temperature[h]
# computed N-tiled with flash-style running maxima and a (D,D) cross accumulator:
#   T[c,c'] = sum_n exp(q[n,c]-mq[c]) * exp(k[n,c']-mk[c'])
#   gate[c] = sigmoid( (1/(d*lq[c])) * sum_{c' in head(c)} T[c,c'] / lk[c'] ) * temp

def _chan_gate_kernel(x_ref, q_ref, lng_ref, lnb_ref, t_ref, o_ref,
                      mq_ref, lq_ref, mk_ref, lk_ref, t_acc_ref, *,
                      eps, head_dim, n_true, needs_mask):
    ni = pl.program_id(1)
    tn = x_ref.shape[1]
    D = x_ref.shape[2]

    @pl.when(ni == 0)
    def _():
        mq_ref[...] = jnp.full(mq_ref.shape, -1e30, jnp.float32)
        mk_ref[...] = jnp.full(mk_ref.shape, -1e30, jnp.float32)
        lq_ref[...] = jnp.zeros(lq_ref.shape, jnp.float32)
        lk_ref[...] = jnp.zeros(lk_ref.shape, jnp.float32)
        t_acc_ref[...] = jnp.zeros(t_acc_ref.shape, jnp.float32)

    q = q_ref[0].astype(jnp.float32)                      # (tn, D)
    # k = norm2(x), LayerNorm fused here (no standalone LN pass)
    xf = x_ref[0].astype(jnp.float32)
    mu = jnp.mean(xf, axis=-1, keepdims=True)
    xc = xf - mu
    var = jnp.mean(xc * xc, axis=-1, keepdims=True)
    k = xc * lax.rsqrt(var + eps) * lng_ref[...] + lnb_ref[...]

    if needs_mask:
        tpos = ni * tn + lax.broadcasted_iota(jnp.int32, (tn, 1), 0)
        valid = tpos < n_true
        q = jnp.where(valid, q, -1e30)
        k = jnp.where(valid, k, -1e30)

    mq_new = jnp.maximum(mq_ref[...], jnp.max(q, axis=0, keepdims=True))
    mk_new = jnp.maximum(mk_ref[...], jnp.max(k, axis=0, keepdims=True))
    aq = jnp.exp(mq_ref[...] - mq_new)                    # (1, D)
    ak = jnp.exp(mk_ref[...] - mk_new)
    eq = jnp.exp(q - mq_new)                              # (tn, D)
    ek = jnp.exp(k - mk_new)
    lq_ref[...] = aq * lq_ref[...] + jnp.sum(eq, axis=0, keepdims=True)
    lk_ref[...] = ak * lk_ref[...] + jnp.sum(ek, axis=0, keepdims=True)
    t_acc_ref[...] = (jnp.reshape(aq, (D, 1)) * ak) * t_acc_ref[...] + jnp.dot(
        eq.T, ek, preferred_element_type=jnp.float32)
    mq_ref[...] = mq_new
    mk_ref[...] = mk_new

    @pl.when(ni == pl.num_programs(1) - 1)
    def _():
        inv_lk = pl.reciprocal(lk_ref[...], approx=True)          # (1, D)
        hr = lax.broadcasted_iota(jnp.int32, (D, D), 0) // head_dim
        hc = lax.broadcasted_iota(jnp.int32, (D, D), 1) // head_dim
        tmat = jnp.where(hr == hc, t_acc_ref[...] * inv_lk, 0.0)   # block-diag
        s = jnp.sum(tmat, axis=1, keepdims=True)                   # (D, 1)
        attn = jnp.reshape(s, (1, D)) * pl.reciprocal(
            lq_ref[...] * float(head_dim), approx=True)
        gate = jax.nn.sigmoid(attn) * t_ref[...]
        o_ref[0] = gate.astype(o_ref.dtype)


def pallas_channel_gate(x, q, ln, temperature, *, num_heads):
    B, N, D = x.shape
    d = D // num_heads
    lng, lnb, eps = ln
    if N <= 1024:
        tn, Np = N, N
    else:
        tn, Np = _pick_tile(N, (512, 256, 128), 512)
    needs_mask = (Np != N)
    xb = x.astype(jnp.bfloat16)
    qb = q.astype(jnp.bfloat16)
    if Np != N:
        xb = jnp.pad(xb, ((0, 0), (0, Np - N), (0, 0)))
        qb = jnp.pad(qb, ((0, 0), (0, Np - N), (0, 0)))
    t_pc = jnp.repeat(temperature.reshape(num_heads), d).reshape(1, D)
    return pl.pallas_call(
        functools.partial(_chan_gate_kernel, eps=eps, head_dim=d, n_true=N,
                          needs_mask=needs_mask),
        out_shape=jax.ShapeDtypeStruct((B, 1, D), jnp.float32),
        grid=(B, Np // tn),
        in_specs=[pl.BlockSpec((1, tn, D), lambda b, n: (b, n, 0)),
                  pl.BlockSpec((1, tn, D), lambda b, n: (b, n, 0)),
                  pl.BlockSpec((1, D), lambda b, n: (0, 0)),
                  pl.BlockSpec((1, D), lambda b, n: (0, 0)),
                  pl.BlockSpec((1, D), lambda b, n: (0, 0))],
        out_specs=pl.BlockSpec((1, 1, D), lambda b, n: (b, 0, 0)),
        scratch_shapes=[pltpu.VMEM((1, D), jnp.float32),
                        pltpu.VMEM((1, D), jnp.float32),
                        pltpu.VMEM((1, D), jnp.float32),
                        pltpu.VMEM((1, D), jnp.float32),
                        pltpu.VMEM((D, D), jnp.float32)],
        compiler_params=pltpu.CompilerParams(
            dimension_semantics=("parallel", "arbitrary"),
            vmem_limit_bytes=_VMEM_LIMIT),
    )(xb, qb, lng.reshape(1, D).astype(jnp.float32),
      lnb.reshape(1, D).astype(jnp.float32), t_pc.astype(jnp.float32))


def _chan_apply_kernel(v_ref, gate_ref, r_ref, g2_ref, lng_ref, lnb_ref, o_ref,
                       *, eps):
    # out = residual + gamma2 * (norm_v(v_pre) * gate)  (norm_v fused here)
    v = v_ref[0].astype(jnp.float32)
    mu = jnp.mean(v, axis=-1, keepdims=True)
    vc = v - mu
    var = jnp.mean(vc * vc, axis=-1, keepdims=True)
    vn = vc * lax.rsqrt(var + eps) * lng_ref[...] + lnb_ref[...]
    y = r_ref[0].astype(jnp.float32) + g2_ref[...] * (vn * gate_ref[0])
    o_ref[0] = y.astype(o_ref.dtype)


def pallas_channel_apply(v_pre, gate, residual, gamma2, nv_g, nv_b, *, eps=1e-5):
    B, N, D = v_pre.shape
    if N <= 1024:
        tn, Np = N, N
    else:
        tn, Np = _pick_tile(N, (512, 256, 128), 512)
    vb = v_pre.astype(jnp.bfloat16)
    rb = residual.astype(jnp.bfloat16)
    if Np != N:
        vb = jnp.pad(vb, ((0, 0), (0, Np - N), (0, 0)))
        rb = jnp.pad(rb, ((0, 0), (0, Np - N), (0, 0)))
    out = pl.pallas_call(
        functools.partial(_chan_apply_kernel, eps=eps),
        out_shape=jax.ShapeDtypeStruct((B, Np, D), jnp.bfloat16),
        grid=(B, Np // tn),
        in_specs=[pl.BlockSpec((1, tn, D), lambda b, n: (b, n, 0)),
                  pl.BlockSpec((1, 1, D), lambda b, n: (b, 0, 0)),
                  pl.BlockSpec((1, tn, D), lambda b, n: (b, n, 0)),
                  pl.BlockSpec((1, D), lambda b, n: (0, 0)),
                  pl.BlockSpec((1, D), lambda b, n: (0, 0)),
                  pl.BlockSpec((1, D), lambda b, n: (0, 0))],
        out_specs=pl.BlockSpec((1, tn, D), lambda b, n: (b, n, 0)),
        compiler_params=pltpu.CompilerParams(
            dimension_semantics=("parallel", "parallel"),
            vmem_limit_bytes=_VMEM_LIMIT),
    )(vb, gate, rb, gamma2.reshape(1, D).astype(jnp.float32),
      nv_g.reshape(1, D).astype(jnp.float32), nv_b.reshape(1, D).astype(jnp.float32))
    if Np != N:
        out = out[:, :N]
    return out


# ----------------------------- depthwise 3x3 conv ----------------------------

def _dwconv3x3_kernel(x_ref, w_ref, b_ref, o_ref, *, H, W, activation):
    x = x_ref[0]                                   # (H+2, W+2, tc) bf16
    w = w_ref[...]                                 # (9, tc) f32
    acc = jnp.zeros((H, W, x.shape[-1]), jnp.float32) + b_ref[...]
    for kh in range(3):
        for kw in range(3):
            wk = w[kh * 3 + kw:kh * 3 + kw + 1, :]          # (1, tc)
            acc = acc + x[kh:kh + H, kw:kw + W, :] * wk
    if activation == "gelu":
        acc = _gelu(acc)
    o_ref[0] = acc.astype(o_ref.dtype)


def _dwconv_tc(C, H, W):
    budget = 2 * 1024 * 1024
    cands = [c for c in (512, 256, 128) if C % c == 0]
    for c in cands:
        if (H + 2) * (W + 2) * c * 2 <= budget:
            return c
    return cands[-1] if cands else C


def pallas_dwconv3x3(x_nhwc, w9c, bias, *, activation=None):
    """Depthwise 3x3 conv (stride 1, pad 1), bf16 streams, channel-tiled."""
    # TODO(synk): add row-strip (halo) tiling for very large spatial extents.
    B, H, W, C = x_nhwc.shape
    xp = jnp.pad(x_nhwc.astype(jnp.bfloat16), ((0, 0), (1, 1), (1, 1), (0, 0)))
    tc = _dwconv_tc(C, H, W)
    return pl.pallas_call(
        functools.partial(_dwconv3x3_kernel, H=H, W=W, activation=activation),
        out_shape=jax.ShapeDtypeStruct((B, H, W, C), jnp.bfloat16),
        grid=(B, C // tc),
        in_specs=[pl.BlockSpec((1, H + 2, W + 2, tc), lambda b, c: (b, 0, 0, c)),
                  pl.BlockSpec((9, tc), lambda b, c: (0, c)),
                  pl.BlockSpec((1, tc), lambda b, c: (0, c))],
        out_specs=pl.BlockSpec((1, H, W, tc), lambda b, c: (b, 0, 0, c)),
        compiler_params=pltpu.CompilerParams(
            dimension_semantics=("parallel", "parallel"),
            vmem_limit_bytes=_VMEM_LIMIT),
    )(xp, w9c.astype(jnp.float32), bias.reshape(1, C).astype(jnp.float32))


# ----------------------------- model pieces ----------------------------------

def conv3x3_bn(x_nhwc, w_oihw, bn, stride, activation=None):
    """3x3 conv (bias=False) + BatchNorm (eval) [+ GELU]."""
    B, H, W, Cin = x_nhwc.shape
    Cout = w_oihw.shape[0]
    scale = bn['gamma'] / jnp.sqrt(bn['var'] + bn['eps'])
    shift = bn['beta'] - bn['mean'] * scale
    if 9 * Cin < 128:
        # tiny-K stem conv underfills the MXU contraction: use the XLA conv.
        w = jnp.transpose(w_oihw, (2, 3, 1, 0)) * scale[None, None, None, :]
        y = lax.conv_general_dilated(
            x_nhwc.astype(jnp.float32), w.astype(jnp.float32),
            window_strides=(stride, stride), padding=((1, 1), (1, 1)),
            dimension_numbers=('NHWC', 'HWIO', 'NHWC'))
        y = y + shift
        if activation == "gelu":
            y = _gelu(y)
        return y.astype(jnp.bfloat16)
    # bf16 im2col + fused matmul (BN folded into weights/bias, GELU in epilogue)
    # TODO(synk): move im2col inside the matmul kernel (9-tap K loop with halo
    #             row blocks) to avoid the 9x patches tensor in HBM.
    w = jnp.transpose(w_oihw, (2, 3, 1, 0)).reshape(9 * Cin, Cout) * scale[None, :]
    xp = jnp.pad(x_nhwc.astype(jnp.bfloat16), ((0, 0), (1, 1), (1, 1), (0, 0)))
    Ho = (H + 2 - 3) // stride + 1
    Wo = (W + 2 - 3) // stride + 1
    cols = []
    for kh in range(3):
        for kw in range(3):
            cols.append(lax.slice(
                xp, (0, kh, kw, 0),
                (B, kh + (Ho - 1) * stride + 1, kw + (Wo - 1) * stride + 1, Cin),
                (1, stride, stride, 1)))
    patches = jnp.concatenate(cols, axis=-1)               # (B, Ho, Wo, 9*Cin)
    return pallas_linear(patches, w, shift, activation=activation)


def build_pos_encoding(Hp, Wp, p, embed_dim):
    """Fourier positional encoding; constant per (Hp, Wp), precomputed once."""
    hidden = p['hidden_dim']
    temp = p['temperature']
    scale, eps = 2 * math.pi, 1e-6
    y_embed = jnp.arange(1, Hp + 1, dtype=jnp.float32)[:, None] * jnp.ones((1, Wp), jnp.float32)
    x_embed = jnp.ones((Hp, 1), jnp.float32) * jnp.arange(1, Wp + 1, dtype=jnp.float32)[None, :]
    y_embed = y_embed / (y_embed[-1:, :] + eps) * scale
    x_embed = x_embed / (x_embed[:, -1:] + eps) * scale
    i = jnp.arange(hidden, dtype=jnp.float32)
    dim_t = temp ** (2 * jnp.floor(i / 2) / hidden)

    def interleave(pe):
        return jnp.stack([jnp.sin(pe[..., 0::2]), jnp.cos(pe[..., 1::2])],
                         axis=-1).reshape(*pe.shape[:-1], -1)

    pos_x = interleave(x_embed[..., None] / dim_t)
    pos_y = interleave(y_embed[..., None] / dim_t)
    pos = jnp.concatenate([pos_y, pos_x], axis=-1)          # (Hp, Wp, 2*hidden)
    pos = pallas_linear(pos, p['proj_w'], p['proj_b'])      # 1x1 conv == linear
    return pos.reshape(1, Hp * Wp, embed_dim)


def token_mixing(x, p, ln1, *, num_heads, residual, gamma1):
    """TokenMixing: LN fused into q / kv projections, flash SDPA on fused kv,
    gamma1 * out + residual fused into the output projection."""
    D = x.shape[-1]
    d = D // num_heads
    q = pallas_linear(x, p['q_w'], p['q_b'], ln=ln1)
    kv = pallas_linear(x, p['kv_w'], p['kv_b'], ln=ln1)
    o = pallas_flash_sdpa(q, kv, num_heads=num_heads, scale=d ** -0.5)
    return pallas_linear(o, p['proj_w'], p['proj_b'],
                         residual=residual, gamma=gamma1)


def channel_processing(x, Hp, Wp, p, ln2, *, num_heads, gamma2):
    """ChannelProcessing: LN fused into q / fc1 projections and the gate kernel,
    dwconv+GELU, fc2; norm_v + gate + gamma2*residual fused in the apply kernel."""
    B, N, D = x.shape
    hidden = p['fc1_w'].shape[1]
    q = pallas_linear(x, p['q_w'], p['q_b'], ln=ln2)
    h1 = pallas_linear(x, p['fc1_w'], p['fc1_b'], ln=ln2)
    h1 = pallas_dwconv3x3(h1.reshape(B, Hp, Wp, hidden), p['dw_w'], p['dw_b'],
                          activation="gelu")
    v_pre = pallas_linear(h1.reshape(B, N, hidden), p['fc2_w'], p['fc2_b'])
    gate = pallas_channel_gate(x, q, ln2, p['temperature'], num_heads=num_heads)
    return pallas_channel_apply(v_pre, gate, x, gamma2,
                                p['norm_v_g'], p['norm_v_b'], eps=1e-5)


def fan_block_forward(x, Hp, Wp, p, *, num_heads):
    ln1 = (p['norm1_g'], p['norm1_b'], 1e-6)
    x = token_mixing(x, p['attn'], ln1, num_heads=num_heads,
                     residual=x, gamma1=p['gamma1'])
    ln2 = (p['norm2_g'], p['norm2_b'], 1e-6)
    x = channel_processing(x, Hp, Wp, p['mlp'], ln2, num_heads=num_heads,
                           gamma2=p['gamma2'])
    return x


def class_attention_block_forward(x, p, *, num_heads):
    B, N1, D = x.shape
    d = D // num_heads
    xn = pallas_layernorm(x, p['norm1_g'], p['norm1_b'], eps=1e-6)
    # q only for the cls token (ClassAttn); k/v fused over all tokens.
    q = pallas_linear(xn[:, :1], p['q_w'], p['q_b'])
    kv_w = jnp.concatenate([p['k_w'], p['v_w']], axis=1)
    kv_b = jnp.concatenate([p['k_b'], p['v_b']], axis=0)
    kv = pallas_linear(xn, kv_w, kv_b)
    o = pallas_flash_sdpa(q, kv, num_heads=num_heads, scale=d ** -0.5)
    # cls residual fused into the output projection
    cls1 = pallas_linear(o, p['proj_w'], p['proj_b'],
                         residual=x[:, :1], gamma=p['gamma1'])
    # non-cls tokens: final = 2*(x + gamma1*xn)  (reference quirk: x_res + x)
    g1 = p['gamma1'].astype(jnp.float32)
    tok = (2.0 * (x[:, 1:].astype(jnp.float32)
                  + g1 * xn[:, 1:].astype(jnp.float32))).astype(jnp.bfloat16)
    # tokens_norm=False path: only the cls token goes through norm2
    cls_n = pallas_layernorm(cls1, p['norm2_g'], p['norm2_b'], eps=1e-6)
    h = pallas_linear(cls_n, p['fc1_w'], p['fc1_b'], activation="gelu")
    cls_new = pallas_linear(h, p['fc2_w'], p['fc2_b'],
                            residual=cls_n, gamma=p['gamma2'])
    return jnp.concatenate([cls_new, tok], axis=1)


def fan_forward(x_nchw, params, *, num_heads, out_index=(4, 7, 11)):
    B = x_nchw.shape[0]
    x = jnp.transpose(x_nchw, (0, 2, 3, 1)).astype(jnp.float32)    # NCHW -> NHWC
    pe = params['patch_embed']
    x = conv3x3_bn(x, pe['c1_w'], pe['bn1'], stride=2, activation="gelu")
    x = conv3x3_bn(x, pe['c2_w'], pe['bn2'], stride=2, activation="gelu")
    x = conv3x3_bn(x, pe['c3_w'], pe['bn3'], stride=1)
    _, Hp, Wp, D = x.shape
    x = x.reshape(B, Hp * Wp, D)
    x = (x + params['pos_encoding']).astype(jnp.bfloat16)          # bf16 stream

    outs = []
    for idx, blk in enumerate(params['blocks']):
        x = fan_block_forward(x, Hp, Wp, blk, num_heads=num_heads)
        if idx in out_index:
            outs.append(jnp.transpose(x.reshape(B, Hp, Wp, D),
                                      (0, 3, 1, 2)).astype(jnp.float32))

    cls = jnp.broadcast_to(params['cls_token'].astype(x.dtype), (B, 1, D))
    x = jnp.concatenate([cls, x], axis=1)
    for cblk in params['cls_attn_blocks']:
        x = class_attention_block_forward(x, cblk, num_heads=num_heads)
    outs.append(jnp.transpose(x[:, 1:].reshape(B, Hp, Wp, D),
                              (0, 3, 1, 2)).astype(jnp.float32))
    return outs


# ----------------------------- parameter init --------------------------------

def init_fan_params(key, *, in_chans, embed_dim, depth, num_heads, mlp_ratio,
                    cls_attn_layers, pos_hidden_dim=32, eta=1.0):
    D = embed_dim
    hidden = int(D * mlp_ratio)
    keys = iter(jax.random.split(key, 512))

    def tn(shape, std=0.02):
        return std * jax.random.truncated_normal(next(keys), -2.0, 2.0, shape,
                                                 jnp.float32)

    def conv_w(cout, cin, k=3):
        return jax.random.normal(next(keys), (cout, cin, k, k),
                                 jnp.float32) * math.sqrt(2.0 / (k * k * cout))

    def bn(c):
        return dict(gamma=jnp.ones((c,), jnp.float32), beta=jnp.zeros((c,), jnp.float32),
                    mean=jnp.zeros((c,), jnp.float32), var=jnp.ones((c,), jnp.float32),
                    eps=1e-5)

    params = {
        'patch_embed': dict(c1_w=conv_w(D // 4, in_chans), bn1=bn(D // 4),
                            c2_w=conv_w(D // 2, D // 4), bn2=bn(D // 2),
                            c3_w=conv_w(D, D // 2), bn3=bn(D)),
        'pos_embed': dict(proj_w=tn((2 * pos_hidden_dim, D)),
                          proj_b=jnp.zeros((D,), jnp.float32),
                          hidden_dim=pos_hidden_dim, temperature=10000.0),
        'cls_token': tn((1, 1, D)),
    }

    blocks = []
    for _ in range(depth):
        blocks.append(dict(
            norm1_g=jnp.ones((D,), jnp.float32), norm1_b=jnp.zeros((D,), jnp.float32),
            norm2_g=jnp.ones((D,), jnp.float32), norm2_b=jnp.zeros((D,), jnp.float32),
            gamma1=eta * jnp.ones((D,), jnp.float32), gamma2=eta * jnp.ones((D,), jnp.float32),
            attn=dict(q_w=tn((D, D)), q_b=jnp.zeros((D,), jnp.float32),
                      kv_w=tn((D, 2 * D)), kv_b=jnp.zeros((2 * D,), jnp.float32),
                      proj_w=tn((D, D)), proj_b=jnp.zeros((D,), jnp.float32)),
            mlp=dict(temperature=jnp.ones((num_heads,), jnp.float32),
                     q_w=tn((D, D)), q_b=jnp.zeros((D,), jnp.float32),
                     fc1_w=tn((D, hidden)), fc1_b=jnp.zeros((hidden,), jnp.float32),
                     # TODO(synk): dw_w rows ordered kh*3+kw; verify against the
                     #             PyTorch (C,1,3,3) layout when loading checkpoints.
                     dw_w=jax.random.normal(next(keys), (9, hidden), jnp.float32)
                     * math.sqrt(2.0 / 9.0),
                     dw_b=jnp.zeros((hidden,), jnp.float32),
                     fc2_w=tn((hidden, D)), fc2_b=jnp.zeros((D,), jnp.float32),
                     norm_v_g=jnp.ones((D,), jnp.float32),
                     norm_v_b=jnp.zeros((D,), jnp.float32)),
        ))
    params['blocks'] = blocks

    cls_blocks = []
    for _ in range(cls_attn_layers):
        cls_blocks.append(dict(
            norm1_g=jnp.ones((D,), jnp.float32), norm1_b=jnp.zeros((D,), jnp.float32),
            norm2_g=jnp.ones((D,), jnp.float32), norm2_b=jnp.zeros((D,), jnp.float32),
            gamma1=eta * jnp.ones((D,), jnp.float32), gamma2=eta * jnp.ones((D,), jnp.float32),
            q_w=tn((D, D)), q_b=jnp.zeros((D,), jnp.float32),
            k_w=tn((D, D)), k_b=jnp.zeros((D,), jnp.float32),
            v_w=tn((D, D)), v_b=jnp.zeros((D,), jnp.float32),
            proj_w=tn((D, D)), proj_b=jnp.zeros((D,), jnp.float32),
            fc1_w=tn((D, hidden)), fc1_b=jnp.zeros((hidden,), jnp.float32),
            fc2_w=tn((hidden, D)), fc2_b=jnp.zeros((D,), jnp.float32),
        ))
    params['cls_attn_blocks'] = cls_blocks
    return params


# ----------------------------- main -------------------------------------------

if __name__ == "__main__":
    B, C_IN, IMG = 2, 3, 16          # small shapes; strides 2/2/1 -> Hp=Wp=4, N=16
    EMBED_DIM, DEPTH, HEADS = 32, 5, 4
    MLP_RATIO, CLS_LAYERS = 2.0, 2

    key = jax.random.PRNGKey(0)
    kp, kx = jax.random.split(key)
    params = init_fan_params(kp, in_chans=C_IN, embed_dim=EMBED_DIM, depth=DEPTH,
                             num_heads=HEADS, mlp_ratio=MLP_RATIO,
                             cls_attn_layers=CLS_LAYERS)

    # Fourier positional encoding is constant per resolution: precompute outside
    # the jitted forward (keeps python-int hyperparams out of traced args).
    Hp = Wp = IMG // 4
    pos_params = params.pop('pos_embed')
    params['pos_encoding'] = build_pos_encoding(Hp, Wp, pos_params, EMBED_DIM)

    x = jax.random.normal(kx, (B, C_IN, IMG, IMG), jnp.float32)

    fwd = jax.jit(functools.partial(fan_forward, num_heads=HEADS))
    outs = fwd(x, params)
    for o in outs:
        jax.block_until_ready(o)
    assert all(o.shape == (B, EMBED_DIM, Hp, Wp) for o in outs)
    print("KERNEL_OK")
</pallas_src>

<mosaic_0001>
module attributes {stable_mosaic.version = 11 : i64} {
  func.func @_matmul_kernel(%arg0: i32, %arg1: i32, %arg2: i32, %arg3: memref<16x64xbf16, #tpu.memory_space<vmem>>, %arg4: memref<64x32xbf16, #tpu.memory_space<vmem>>, %arg5: memref<1x32xf32, #tpu.memory_space<vmem>>, %arg6: memref<16x32xbf16, #tpu.memory_space<vmem>>, %arg7: memref<16x32xf32, #tpu.memory_space<vmem>>) attributes {dimension_semantics = [#tpu.dimension_semantics<parallel>, #tpu.dimension_semantics<parallel>, #tpu.dimension_semantics<arbitrary>], iteration_bounds = array<i64: 1, 1, 1>, scalar_prefetch = 0 : i64, scratch_operands = 1 : i64, tpu.core_type = #tpu.core_type<tc>, window_params = [{transform_indices = @transform_0, window_bounds = array<i64: 16, 64>}, {transform_indices = @transform_1, window_bounds = array<i64: 64, 32>}, {transform_indices = @transform_2, window_bounds = array<i64: 1, 32>}, {transform_indices = @transform_3, window_bounds = array<i64: 16, 32>}]} {
    %c0_i32 = arith.constant 0 : i32
    %0 = arith.cmpi eq, %arg2, %c0_i32 : i32
    %1 = arith.extui %0 : i1 to i32
    %c0_i32_0 = arith.constant 0 : i32
    %2 = arith.cmpi ne, %1, %c0_i32_0 : i32
    scf.if %2 {
      %cst_10 = arith.constant 0.000000e+00 : f32
      %12 = vector.broadcast %cst_10 : f32 to vector<16x32xf32>
      %c0_11 = arith.constant 0 : index
      %c0_12 = arith.constant 0 : index
      %13 = vector.load %arg7[%c0_11, %c0_12] : memref<16x32xf32, #tpu.memory_space<vmem>>, vector<16x32xf32>
      tpu.vector_store %arg7[%c0_11, %c0_12], %12 {strides = array<i32>} : memref<16x32xf32, #tpu.memory_space<vmem>>, vector<16x32xf32>,
    } else {
    }
    %c0 = arith.constant 0 : index
    %c0_1 = arith.constant 0 : index
    %3 = vector.load %arg3[%c0, %c0_1] : memref<16x64xbf16, #tpu.memory_space<vmem>>, vector<16x64xbf16>
    %c0_2 = arith.constant 0 : index
    %c0_3 = arith.constant 0 : index
    %4 = vector.load %arg7[%c0_2, %c0_3] : memref<16x32xf32, #tpu.memory_space<vmem>>, vector<16x32xf32>
    %c0_4 = arith.constant 0 : index
    %c0_5 = arith.constant 0 : index
    %5 = vector.load %arg4[%c0_4, %c0_5] : memref<64x32xbf16, #tpu.memory_space<vmem>>, vector<64x32xbf16>
    %cst = arith.constant dense<0.000000e+00> : vector<16x32xf32>
    %6 = tpu.matmul %3, %5, %cst {dimension_numbers = #tpu.dot_dimension_numbers<[1], [0], [0], [1], [0, 0, 1, 1], [], []>} : vector<16x64xbf16>, vector<64x32xbf16>, vector<16x32xf32> -> vector<16x32xf32>
    %7 = arith.addf %4, %6 : vector<16x32xf32>
    %c0_6 = arith.constant 0 : index
    %c0_7 = arith.constant 0 : index
    %8 = vector.load %arg7[%c0_6, %c0_7] : memref<16x32xf32, #tpu.memory_space<vmem>>, vector<16x32xf32>
    tpu.vector_store %arg7[%c0_6, %c0_7], %7 {strides = array<i32>} : memref<16x32xf32, #tpu.memory_space<vmem>>, vector<16x32xf32>,
    %c0_i32_8 = arith.constant 0 : i32
    %9 = arith.cmpi eq, %arg2, %c0_i32_8 : i32
    %10 = arith.extui %9 : i1 to i32
    %c0_i32_9 = arith.constant 0 : i32
    %11 = arith.cmpi ne, %10, %c0_i32_9 : i32
    scf.if %11 {
      %c0_10 = arith.constant 0 : index
      %c0_11 = arith.constant 0 : index
      %12 = vector.load %arg7[%c0_10, %c0_11] : memref<16x32xf32, #tpu.memory_space<vmem>>, vector<16x32xf32>
      %c0_12 = arith.constant 0 : index
      %c0_13 = arith.constant 0 : index
      %13 = vector.load %arg5[%c0_12, %c0_13] : memref<1x32xf32, #tpu.memory_space<vmem>>, vector<1x32xf32>
      %14 = vector.broadcast %13 : vector<1x32xf32> to vector<16x32xf32>
      %15 = arith.addf %12, %14 : vector<16x32xf32>
      %16 = arith.truncf %15 : vector<16x32xf32> to vector<16x32xbf16>
      %c0_14 = arith.constant 0 : index
      %c0_15 = arith.constant 0 : index
      %17 = vector.load %arg6[%c0_14, %c0_15] : memref<16x32xbf16, #tpu.memory_space<vmem>>, vector<16x32xbf16>
      tpu.vector_store %arg6[%c0_14, %c0_15], %16 {strides = array<i32>} : memref<16x32xbf16, #tpu.memory_space<vmem>>, vector<16x32xbf16>,
    } else {
    }
    return
  }
  func.func @transform_0(%arg0: i32, %arg1: i32, %arg2: i32) -> (i32, i32) {
    %c0_i32 = arith.constant 0 : i32
    return %arg0, %arg2 : i32, i32
  }
  func.func @transform_1(%arg0: i32, %arg1: i32, %arg2: i32) -> (i32, i32) {
    %c0_i32 = arith.constant 0 : i32
    return %arg2, %arg1 : i32, i32
  }
  func.func @transform_2(%arg0: i32, %arg1: i32, %arg2: i32) -> (i32, i32) {
    %c0_i32 = arith.constant 0 : i32
    %c0_i32_0 = arith.constant 0 : i32
    return %c0_i32, %arg1 : i32, i32
  }
  func.func @transform_3(%arg0: i32, %arg1: i32, %arg2: i32) -> (i32, i32) {
    %c0_i32 = arith.constant 0 : i32
    return %arg0, %arg1 : i32, i32
  }
}

</mosaic_0001>

<llo_original>
// kernel: tpu_custom_call.1
$region0: #{tpu_custom_call.1}
  #allocation0 [shape = 'u32[]', space=smem, size = 0x4, offset = 0x4, fixed_abs, tag = 'smem constant byte address 0x4 - core index']
  #allocation1 [shape = 'u32[144,128]{1,0:T(1,128)}', space=vmem, size = 0x12000, scoped, tag = 'internal scratch']
  #allocation2 [shape = 'f32[16,32]{1,0:T(8,128)}', space=vmem, size = 0x2000, scoped, tag = 'scratch operand']
  %s0 = inlined_call_operand.vmem [shape: bf16[16,64], index: 0, kind: input, shape index: {}]
  %s1 = inlined_call_operand.vmem [shape: bf16[64,32], index: 1, kind: input, shape index: {}]
  %s2 = inlined_call_operand.vmem [shape: f32[1,32], index: 2, kind: input, shape index: {}]
  %s3 = inlined_call_operand.hbm [shape: bf16[16,32], index: 3, kind: output, shape index: {}]
  %s4 = sld [smem:[#allocation0]]
  $region30: #{tpu_custom_call.1} parent=0
    _
  %s6 = ssub.s32 1, %s4
  %s7 = scalar_select 0, %s6, %s4
  $region1: #{tpu_custom_call.1} parent=0
    #allocation3 [shape = 'u8[4096]{0}', space=vmem, size = 0x1000, scoped, tag = 'output window, operand 0, single buffered']
    #allocation4 [shape = 's32[1]{0}', space=sflag, size = 0x4, scoped, tag = 'scoped memory for tpu_custom_call.1']
    %8 = vsyncpa [#allocation4], 0
    // Predicated region
    $region2: #{tpu_custom_call.1} parent=1 // pred_check
      _
    $region3: #{tpu_custom_call.1} parent=1 // pred_check_branch
      %10 = sbr.rel (0) target = $region5
    $region4: #{tpu_custom_call.1} parent=1 // pred_region
      _
    $region5: #{tpu_custom_call.1} parent=1 // pred_fallthru
      _
    // Predicated region
    $region6: #{tpu_custom_call.1} parent=1 // pred_check
      _
    $region7: #{tpu_custom_call.1} parent=1 // pred_check_branch
      %12 = sbr.rel (0) target = $region9
    $region8: #{tpu_custom_call.1} parent=1 // pred_region
      _
    $region9: #{tpu_custom_call.1} parent=1 // pred_fallthru
      _
    // Predicated region
    $region10: #{tpu_custom_call.1} parent=1 // pred_check
      _
    $region11: #{tpu_custom_call.1} parent=1 // pred_check_branch
      %14 = sbr.rel (0) target = $region13
    $region12: #{tpu_custom_call.1} parent=1 // pred_region
      _
    $region13: #{tpu_custom_call.1} parent=1 // pred_fallthru
      _
    %p16 = scmp.eq.s32.totalorder 0, 0
    // Predicated region
    $region14: #{tpu_custom_call.1} parent=1 // pred_check
      %p17 = pneg %p16
    $region15: #{tpu_custom_call.1} parent=1 // pred_check_branch
      %19 = sbr.rel (%p17) target = $region17
    $region16: #{tpu_custom_call.1} parent=1 // pred_region
      %vm20 = vcmask 261120
      %21 = vst.msk [vmem:[#allocation2] sm:$0xff] %vm20, 0.0
      %22 = vst.msk [vmem:[#allocation2 + $0x8] sm:$0xff] %vm20, 0.0
    $region17: #{tpu_custom_call.1} parent=1 // pred_fallthru
      _
    %v23 = vld [vmem:[%s0] sm:$0xf]
    %v24 = vld [vmem:[%s0 + $0x4] sm:$0xf]
    %v25 = vld [vmem:[#allocation2] sm:$0xff]
    %v26 = vld [vmem:[#allocation2 + $0x8] sm:$0xff]
    %v27 = vld [vmem:[%s1] sm:$0xf]
    %v28 = vld [vmem:[%s1 + $0x4] sm:$0xf]
    %v29 = vld [vmem:[%s1 + $0x8] sm:$0xf]
    %v30 = vld [vmem:[%s1 + $0xc] sm:$0xf]
    %v31 = vld [vmem:[%s1 + $0x10] sm:$0xf]
    %v32 = vld [vmem:[%s1 + $0x14] sm:$0xf]
    %v33 = vld [vmem:[%s1 + $0x18] sm:$0xf]
    %v34 = vld [vmem:[%s1 + $0x1c] sm:$0xf]
    %v37 = vunpack.c.l.b16 %v23
    %v38 = vunpack.c.l.b16 %v24
    %v39 = vpack.c.b16 %v38, %v37
    %v48 = vunpack.c.l.b16 %v27
    %v49 = vunpack.c.l.b16 %v28
    %v50 = vunpack.c.l.b16 %v29
    %v51 = vunpack.c.l.b16 %v30
    %v52 = vunpack.c.l.b16 %v31
    %v53 = vunpack.c.l.b16 %v32
    %v54 = vunpack.c.l.b16 %v33
    %v55 = vunpack.c.l.b16 %v34
    %v56 = vpack.c.b16 %v49, %v48
    %v57 = vpack.c.b16 %v51, %v50
    %v58 = vpack.c.b16 %v53, %v52
    %v59 = vpack.c.b16 %v55, %v54
    %vm64 = vcmask 523264
    %v66 = vsel %vm64, %v39, 0
    %68 = vmatprep.subr.bf16.mxu0 0
    %69 = vmatpush1.bf16.msra.mxu0 %v56
    %70 = vmatprep.subr.bf16.mxu0 0
    %71 = vmatpush1.bf16.msra.mxu0 %v57
    %72 = vmatprep.subr.bf16.mxu0 0
    %73 = vmatpush1.bf16.msra.mxu0 %v58
    %74 = vmatprep.subr.bf16.mxu0 0
    %75 = vmatpush1.bf16.msra.mxu0 %v59
    %76 = vmatprep.subr.bf16.mxu0 0
    %77 = vmatpush1.bf16.msra.mxu0 0
    %78 = vmatprep.subr.bf16.mxu0 0
    %79 = vmatpush1.bf16.msra.mxu0 0
    %80 = vmatprep.subr.bf16.mxu0 0
    %81 = vmatpush1.bf16.msra.mxu0 0
    %82 = vmatprep.subr.bf16.mxu0 0
    %83 = vmatpush1.bf16.msra.mxu0 0
    %84 = vmatprep.subr.bf16.mxu0 0
    %85 = vmatpush1.bf16.msra.mxu0 0
    %86 = vmatprep.subr.bf16.mxu0 0
    %87 = vmatpush1.bf16.msra.mxu0 0
    %88 = vmatprep.subr.bf16.mxu0 0
    %89 = vmatpush1.bf16.msra.mxu0 0
    %90 = vmatprep.subr.bf16.mxu0 0
    %91 = vmatpush1.bf16.msra.mxu0 0
    %92 = vmatprep.subr.bf16.mxu0 0
    %93 = vmatpush1.bf16.msra.mxu0 0
    %94 = vmatprep.subr.bf16.mxu0 0
    %95 = vmatpush1.bf16.msra.mxu0 0
    %96 = vmatprep.subr.bf16.mxu0 0
    %97 = vmatpush1.bf16.msra.mxu0 0
    %98 = vmatprep.subr.bf16.mxu0 0
    %99 = vmatpush1.bf16.msra.mxu0 0
    %100 = vmatprep.mubr.bf16.mxu0 0
    %101 = vmatmul.mubr.bf16.gmra.mrb[0].mxu0 %v66
    %v102 = vpop.f32.mrb[0].mxu0
    %v103 = vadd.f32 0.0, %v102
    %v104 = vpop.f32.mrb[0].mxu0
    %v105 = vpop.f32.mrb[0].mxu0
    %v106 = vadd.f32 0.0, %v105
    %v107 = vpop.f32.mrb[0].mxu0
    %108 = vdwg.mxu0
    %v109 = vadd.f32 %v25, %v103
    %v110 = vadd.f32 %v26, %v106
    %vm111 = vcmask 261120
    %112 = vst.msk [vmem:[#allocation2] sm:$0xff] %vm111, %v109
    %113 = vst.msk [vmem:[#allocation2 + $0x8] sm:$0xff] %vm111, %v110
    // Predicated region
    $region18: #{tpu_custom_call.1} parent=1 // pred_check
      %p114 = pneg %p16
    $region19: #{tpu_custom_call.1} parent=1 // pred_check_branch
      %116 = sbr.rel (%p114) target = $region21
    $region20: #{tpu_custom_call.1} parent=1 // pred_region
      %v117 = vld [vmem:[#allocation2] sm:$0xff]
      %v118 = vld [vmem:[#allocation2 + $0x8] sm:$0xff]
      %v119 = vld [vmem:[%s2] sm:$0x1]
      %v121 = vlaneseq
      %v122 = vshrl.u32 %v121, 7
      %v123 = vsub.s32 0, %v122
      %v124 = vrot.slane %v119, %v123
      %v126 = vadd.f32 %v117, %v124
      %v127 = vadd.f32 %v118, %v124
      %v128 = vpack.c.bf16 %v127, %v126
      %v130 = vunpack.c.l.b16 %v128
      %v131 = vunpack.c.h.b16 %v128
      %v132 = vpack.c.b16 %v130, %v130
      %v133 = vpack.c.b16 %v131, %v131
      %vm136 = vcmask 257024
      %137 = vst.msk [vmem:[#allocation3] sm:$0xf] %vm136, %v132
      %138 = vst.msk [vmem:[#allocation3 + $0x4] sm:$0xf] %vm136, %v133
    $region21: #{tpu_custom_call.1} parent=1 // pred_fallthru
      _
    // Predicated region
    $region22: #{tpu_custom_call.1} parent=1 // pred_check
      _
    $region23: #{tpu_custom_call.1} parent=1 // pred_check_branch
      %140 = sbr.rel (0) target = $region25
    $region24: #{tpu_custom_call.1} parent=1 // pred_region
      %s142 = ssub.s32 128, 128
      %143 = vsyncadd [#allocation4], %s142
      %s144 = sshll.u32 [#allocation3], 4
      %s145 = int_to_ptr.vmem [resolvable:$true] %s144
      %150 = dma.vmem_to_hbm [thread:$0]  %s145, 128, %s3, [#allocation4], 64, 64, 4
    $region25: #{tpu_custom_call.1} parent=1 // pred_fallthru
      _
    // Predicated region
    $region26: #{tpu_custom_call.1} parent=1 // pred_check
      _
    $region27: #{tpu_custom_call.1} parent=1 // pred_check_branch
      %152 = sbr.rel (0) target = $region29
    $region28: #{tpu_custom_call.1} parent=1 // pred_region
      %153 = dma.done [#allocation4], 128
    $region29: #{tpu_custom_call.1} parent=1 // pred_fallthru
      _
    %154 = vsyncpa [#allocation4], 1

</llo_original>
